<compile_context>
chip_gen: v7x
topology: tpu7x:2x2x1
jax: 0.10.0
libtpu: 0.0.40
codegen_flags: <defaults>
</compile_context>

<pallas_src>
import functools

import jax
import jax.numpy as jnp
from jax import lax
from jax.experimental import pallas as pl
from jax.experimental.pallas import tpu as pltpu


def _fiiqa_loss_kernel(preds_ref, targets_ref, out_ref, *, batch_size):
    i = pl.program_id(0)

    x = preds_ref[...].astype(jnp.float32)                 # (TB, C)
    tb, c = x.shape

    # Numerically-stable softmax numerator (EUP exp is the dominant compute).
    m = jnp.max(x, axis=1, keepdims=True)                  # (TB, 1)  XLU
    e = jnp.exp(x - m)                                     # (TB, C)  EUP

    # Class-index expectation via VPU multiply + XLU lane reductions.  The MXU
    # alternative ((TB,C)@(C,2) f32) pays ~a full-width multi-pass matmul for
    # two useful columns, so it is avoided; VPU/XLU slots are idle here.
    cls = lax.broadcasted_iota(jnp.int32, (1, c), 1).astype(jnp.float32)  # (1, C)
    denom = jnp.sum(e, axis=1, keepdims=True)              # (TB, 1)
    wsum = jnp.sum(e * cls, axis=1, keepdims=True)         # (TB, 1)
    expect = wsum * pl.reciprocal(denom, approx=False)     # (TB, 1)

    # Targets arrive lane-dense as (1, TB); one small XLU transpose to (TB, 1).
    tgt = jnp.transpose(targets_ref[...].astype(jnp.float32), (1, 0))    # (TB, 1)

    # SmoothL1 (beta = 1.0).
    diff = expect - tgt
    ad = jnp.abs(diff)
    per = jnp.where(ad < 1.0, 0.5 * diff * diff, ad - 0.5)

    # Mask rows of the (padded) last tile beyond the true batch size.  Applied
    # after `per` so garbage/NaN in padded rows cannot propagate (select).
    row = i * tb + lax.broadcasted_iota(jnp.int32, (tb, 1), 0)
    per = jnp.where(row < batch_size, per, 0.0)

    # Per-tile partial sum, written to this tile's own lane-aligned block
    # (lane 0 carries the value; the broadcast just fills the block).
    part = jnp.sum(per, axis=0, keepdims=True)             # (1, 1)
    out_ref[...] = jnp.broadcast_to(part, out_ref.shape).astype(jnp.float32)


def fiiqa_loss(fiiqa_preds, fiiqa_targets, *, block_b=4096):
    """fiiqa_preds: [B, C] float logits; fiiqa_targets: [B] (any numeric dtype)."""
    B, C = fiiqa_preds.shape
    TB = min(block_b, B)            # TB == full B, or the (multiple-of-8) block_b
    grid = pl.cdiv(B, TB)

    # Metadata-only reshape to a lane-dense (1, B) row; dtype preserved,
    # cast happens inside the kernel.
    targets_row = fiiqa_targets.reshape(1, B)

    kernel = functools.partial(_fiiqa_loss_kernel, batch_size=B)

    # Only raise the scoped-VMEM limit when the tile is actually large
    # (TB=4096, C padded to 256 lanes: ~8 MiB of double-buffered preds plus
    # f32 intermediates).  Small tiles run fine under every default.
    cp_kwargs = dict(dimension_semantics=("parallel",))
    if TB >= 2048:
        cp_kwargs["vmem_limit_bytes"] = 48 << 20

    out = pl.pallas_call(
        kernel,
        out_shape=jax.ShapeDtypeStruct((1, grid * 128), jnp.float32),
        grid_spec=pltpu.PrefetchScalarGridSpec(
            num_scalar_prefetch=0,
            grid=(grid,),
            in_specs=[
                pl.BlockSpec((TB, C), lambda i: (i, 0)),   # preds tile
                pl.BlockSpec((1, TB), lambda i: (0, i)),   # targets tile (lane-dense)
            ],
            out_specs=pl.BlockSpec((1, 128), lambda i: (0, i)),
        ),
        compiler_params=pltpu.CompilerParams(**cp_kwargs),
    )(fiiqa_preds, targets_row)

    # Lane 0 of each (1, 128) block holds that tile's partial SmoothL1 sum.
    partials = out.reshape(grid, 128)[:, 0]                 # (grid,)
    return jnp.sum(partials) / jnp.float32(B)


def _reference_loss(preds, targets):
    prob = jax.nn.softmax(preds.astype(jnp.float32), axis=1)
    expect = jnp.sum(
        jnp.arange(0, preds.shape[1], dtype=jnp.float32) * prob, axis=1)
    diff = expect - targets.astype(jnp.float32)
    ad = jnp.abs(diff)
    return jnp.mean(jnp.where(ad < 1.0, 0.5 * diff * diff, ad - 0.5))


if __name__ == "__main__":
    key = jax.random.PRNGKey(0)
    k1, k2 = jax.random.split(key)

    B, C = 8, 200
    fiiqa_preds = jax.random.normal(k1, (B, C), dtype=jnp.float32)
    fiiqa_targets = jax.random.randint(k2, (B,), 0, C, dtype=jnp.int32)

    loss = fiiqa_loss(fiiqa_preds, fiiqa_targets)
    loss = jax.block_until_ready(loss)

    ref = _reference_loss(fiiqa_preds, fiiqa_targets)
    # Tolerance covers the reduction-order difference (single reciprocal of the
    # softmax denominator vs. per-element division in the reference); loss
    # magnitude is O(10-100), so any real bug would blow far past this.
    assert jnp.allclose(loss, ref, rtol=1e-4, atol=1e-4), (loss, ref)

    print("KERNEL_OK")
</pallas_src>

<mosaic_0001>
module attributes {stable_mosaic.version = 11 : i64} {
  func.func @_fiiqa_loss_kernel(%arg0: i32, %arg1: memref<8x200xf32, #tpu.memory_space<vmem>>, %arg2: memref<1x8xi32, #tpu.memory_space<vmem>>, %arg3: memref<1x128xf32, #tpu.memory_space<vmem>>) attributes {dimension_semantics = [#tpu.dimension_semantics<parallel>], iteration_bounds = array<i64: 1>, scalar_prefetch = 0 : i64, scratch_operands = 0 : i64, tpu.core_type = #tpu.core_type<tc>, window_params = [{transform_indices = @transform_0, window_bounds = array<i64: 8, 200>}, {transform_indices = @transform_1, window_bounds = array<i64: 1, 8>}, {transform_indices = @transform_2, window_bounds = array<i64: 1, 128>}]} {
    %c0 = arith.constant 0 : index
    %c0_0 = arith.constant 0 : index
    %0 = vector.load %arg1[%c0, %c0_0] : memref<8x200xf32, #tpu.memory_space<vmem>>, vector<8x200xf32>
    %cst = arith.constant dense<0xFF800000> : vector<8xf32>
    %1 = vector.multi_reduction <maximumf>, %0, %cst [1] : vector<8x200xf32> to vector<8xf32>
    %2 = vector.shape_cast %1 : vector<8xf32> to vector<8x1xf32>
    %3 = vector.broadcast %2 : vector<8x1xf32> to vector<8x200xf32>
    %4 = arith.subf %0, %3 : vector<8x200xf32>
    %5 = math.exp %4 : vector<8x200xf32>
    %6 = tpu.iota {dimensions = array<i32: 1>} : vector<1x200xi32>
    %7 = arith.sitofp %6 : vector<1x200xi32> to vector<1x200xf32>
    %cst_1 = arith.constant dense<0.000000e+00> : vector<8xf32>
    %8 = vector.multi_reduction <add>, %5, %cst_1 [1] : vector<8x200xf32> to vector<8xf32>
    %9 = vector.shape_cast %8 : vector<8xf32> to vector<8x1xf32>
    %10 = vector.broadcast %7 : vector<1x200xf32> to vector<8x200xf32>
    %11 = arith.mulf %5, %10 : vector<8x200xf32>
    %cst_2 = arith.constant dense<0.000000e+00> : vector<8xf32>
    %12 = vector.multi_reduction <add>, %11, %cst_2 [1] : vector<8x200xf32> to vector<8xf32>
    %13 = vector.shape_cast %12 : vector<8xf32> to vector<8x1xf32>
    %14 = tpu.reciprocal %9 : vector<8x1xf32> -> vector<8x1xf32>
    %15 = arith.mulf %13, %14 : vector<8x1xf32>
    %c0_3 = arith.constant 0 : index
    %c0_4 = arith.constant 0 : index
    %16 = vector.load %arg2[%c0_3, %c0_4] : memref<1x8xi32, #tpu.memory_space<vmem>>, vector<1x8xi32>
    %17 = arith.sitofp %16 : vector<1x8xi32> to vector<1x8xf32>
    %18 = tpu.transpose %17, [1, 0] : vector<1x8xf32> -> vector<8x1xf32>
    %19 = arith.subf %15, %18 : vector<8x1xf32>
    %20 = math.absf %19 : vector<8x1xf32>
    %cst_5 = arith.constant 1.000000e+00 : f32
    %21 = vector.broadcast %cst_5 : f32 to vector<8x1xf32>
    %22 = arith.cmpf olt, %20, %21 : vector<8x1xf32>
    %cst_6 = arith.constant 5.000000e-01 : f32
    %23 = vector.broadcast %cst_6 : f32 to vector<8x1xf32>
    %24 = arith.mulf %23, %19 : vector<8x1xf32>
    %25 = arith.mulf %24, %19 : vector<8x1xf32>
    %cst_7 = arith.constant 5.000000e-01 : f32
    %26 = vector.broadcast %cst_7 : f32 to vector<8x1xf32>
    %27 = arith.subf %20, %26 : vector<8x1xf32>
    %28 = arith.select %22, %25, %27 : vector<8x1xi1>, vector<8x1xf32>
    %c8_i32 = arith.constant 8 : i32
    %29 = arith.muli %arg0, %c8_i32 : i32
    %30 = tpu.iota {dimensions = array<i32: 0>} : vector<8x1xi32>
    %31 = vector.broadcast %29 : i32 to vector<8x1xi32>
    %32 = arith.addi %31, %30 : vector<8x1xi32>
    %c8_i32_8 = arith.constant 8 : i32
    %33 = vector.broadcast %c8_i32_8 : i32 to vector<8x1xi32>
    %34 = arith.cmpi slt, %32, %33 : vector<8x1xi32>
    %cst_9 = arith.constant 0.000000e+00 : f32
    %35 = vector.broadcast %cst_9 : f32 to vector<8x1xf32>
    %36 = arith.select %34, %28, %35 : vector<8x1xi1>, vector<8x1xf32>
    %cst_10 = arith.constant dense<0.000000e+00> : vector<1xf32>
    %37 = vector.multi_reduction <add>, %36, %cst_10 [0] : vector<8x1xf32> to vector<1xf32>
    %38 = vector.shape_cast %37 : vector<1xf32> to vector<1x1xf32>
    %39 = vector.shape_cast %38 : vector<1x1xf32> to vector<1x1xf32>
    %40 = vector.broadcast %39 : vector<1x1xf32> to vector<1x128xf32>
    %c0_11 = arith.constant 0 : index
    %c0_12 = arith.constant 0 : index
    %41 = vector.load %arg3[%c0_11, %c0_12] : memref<1x128xf32, #tpu.memory_space<vmem>>, vector<1x128xf32>
    tpu.vector_store %arg3[%c0_11, %c0_12], %40 {strides = array<i32>} : memref<1x128xf32, #tpu.memory_space<vmem>>, vector<1x128xf32>,
    return
  }
  func.func @transform_0(%arg0: i32) -> (i32, i32) {
    %c0_i32 = arith.constant 0 : i32
    %c0_i32_0 = arith.constant 0 : i32
    return %arg0, %c0_i32 : i32, i32
  }
  func.func @transform_1(%arg0: i32) -> (i32, i32) {
    %c0_i32 = arith.constant 0 : i32
    %c0_i32_0 = arith.constant 0 : i32
    return %c0_i32, %arg0 : i32, i32
  }
  func.func @transform_2(%arg0: i32) -> (i32, i32) {
    %c0_i32 = arith.constant 0 : i32
    %c0_i32_0 = arith.constant 0 : i32
    return %c0_i32, %arg0 : i32, i32
  }
}

</mosaic_0001>

<llo_original>
// kernel: tpu_custom_call.1
$region0: #{tpu_custom_call.1}
  #allocation0 [shape = 'u32[]', space=smem, size = 0x4, offset = 0x4, fixed_abs, tag = 'smem constant byte address 0x4 - core index']
  #allocation1 [shape = 'u32[144,128]{1,0:T(1,128)}', space=vmem, size = 0x12000, scoped, tag = 'internal scratch']
  %s0 = inlined_call_operand.hbm [shape: f32[8,200], index: 0, kind: input, shape index: {}]
  %s1 = inlined_call_operand.vmem [shape: s32[1,8], index: 1, kind: input, shape index: {}]
  %s2 = inlined_call_operand.hbm [shape: f32[1,128], index: 2, kind: output, shape index: {}]
  %s3 = sld [smem:[#allocation0]]
  $region22: #{tpu_custom_call.1} parent=0
    _
  %s5 = ssub.s32 1, %s3
  %s6 = scalar_select 0, %s5, %s3
  $region1: #{tpu_custom_call.1} parent=0
    #allocation2 [shape = 'u8[8192]{0}', space=vmem, size = 0x2000, scoped, tag = 'input window, operand 0, single buffered']
    #allocation3 [shape = 's32[1]{0}', space=sflag, size = 0x4, scoped, tag = 'scoped memory for tpu_custom_call.1']
    #allocation4 [shape = 's32[1]{0}', space=sflag, size = 0x4, scoped, tag = 'scoped memory for tpu_custom_call.1']
    #allocation5 [shape = 'u8[512]{0}', space=vmem, size = 0x400, scoped, tag = 'output window, operand 0, single buffered']
    %7 = vsyncpa [#allocation3], 0
    %8 = vsyncpa [#allocation4], 0
    // Predicated region
    $region2: #{tpu_custom_call.1} parent=1 // pred_check
      _
    $region3: #{tpu_custom_call.1} parent=1 // pred_check_branch
      %10 = sbr.rel (0) target = $region5
    $region4: #{tpu_custom_call.1} parent=1 // pred_region
      %s12 = ssub.s32 256, 256
      %13 = vsyncadd [#allocation3], %s12
      %s15 = sshll.u32 [#allocation2], 4
      %s16 = int_to_ptr.vmem [resolvable:$true] %s15
      %18 = dma.hbm_to_vmem [thread:$0]  %s0, 256, %s16, [#allocation3]
    $region5: #{tpu_custom_call.1} parent=1 // pred_fallthru
      _
    // Predicated region
    $region6: #{tpu_custom_call.1} parent=1 // pred_check
      _
    $region7: #{tpu_custom_call.1} parent=1 // pred_check_branch
      %20 = sbr.rel (0) target = $region9
    $region8: #{tpu_custom_call.1} parent=1 // pred_region
      _
    $region9: #{tpu_custom_call.1} parent=1 // pred_fallthru
      _
    // Predicated region
    $region10: #{tpu_custom_call.1} parent=1 // pred_check
      _
    $region11: #{tpu_custom_call.1} parent=1 // pred_check_branch
      %22 = sbr.rel (0) target = $region13
    $region12: #{tpu_custom_call.1} parent=1 // pred_region
      %23 = dma.done [#allocation3], 256
    $region13: #{tpu_custom_call.1} parent=1 // pred_fallthru
      _
    %v24 = vld [vmem:[#allocation2] sm:$0xff]
    %v25 = vld [vmem:[#allocation2 + $0x8] sm:$0xff]
    %vm26 = vcmask 588800
    %v27 = vsel %vm26, %v25, -inf
    %v28 = vmax.f32 %v24, %v27
    %29 = vmax.xlane.f32.xlu0 %v28
    %v30 = vpop.xlane.xlu0 %29
    %v31 = vsub.f32 %v24, %v30
    %v32 = vsub.f32 %v25, %v30
    %v33 = vmul.f32 %v31, 1.442695
    %v34 = vpow.pop %v33
    %v35 = vmul.f32 %v32, 1.442695
    %v36 = vpow.pop %v35
    %v37 = vlaneseq
    %v38 = vand.u32 %v37, 127
    %v39 = vadd.s32 %v38, 128
    %v40 = vcvt.s32.f32 %v38
    %v41 = vcvt.s32.f32 %v39
    %v42 = vsel %vm26, %v36, 0.0
    %v43 = vadd.f32 %v34, %v42
    %44 = vadd.xlane.f32.xlu0 %v43
    %v45 = vpop.xlane.xlu0 %44
    %v46 = vmul.f32 %v34, %v40
    %v47 = vmul.f32 %v36, %v41
    %v48 = vsel %vm26, %v47, 0.0
    %v49 = vadd.f32 %v46, %v48
    %50 = vadd.xlane.f32.xlu0 %v49
    %v51 = vpop.xlane.xlu0 %50
    %v52 = vrcp.pop %v45
    %v53 = vmul.f32 %v51, %v52
    %v54 = vld [vmem:[%s1] sm:$0x1]
    %v55 = vcvt.s32.f32 %v54
    %56 = vxpose.xlu0.b32.start [1/16] %v55, 128
    %57 = vxpose.xlu0.b32.cont [2/16] 0.0, 128
    %58 = vxpose.xlu0.b32.cont [3/16] 0.0, 128
    %59 = vxpose.xlu0.b32.cont [4/16] 0.0, 128
    %60 = vxpose.xlu0.b32.cont [5/16] 0.0, 128
    %61 = vxpose.xlu0.b32.cont [6/16] 0.0, 128
    %62 = vxpose.xlu0.b32.cont [7/16] 0.0, 128
    %63 = vxpose.xlu0.b32.cont [8/16] 0.0, 128
    %64 = vxpose.xlu0.b32.cont [9/16] 0.0, 128
    %65 = vxpose.xlu0.b32.cont [10/16] 0.0, 128
    %66 = vxpose.xlu0.b32.cont [11/16] 0.0, 128
    %67 = vxpose.xlu0.b32.cont [12/16] 0.0, 128
    %68 = vxpose.xlu0.b32.cont [13/16] 0.0, 128
    %69 = vxpose.xlu0.b32.cont [14/16] 0.0, 128
    %70 = vxpose.xlu0.b32.cont [15/16] 0.0, 128
    %71 = vxpose.xlu0.b32.end [16/16] 0.0, 128
    %v72 = vpop.trf.xlu0
    %v73 = vpop.trf.xlu0
    %v74 = vpop.trf.xlu0
    %v75 = vpop.trf.xlu0
    %v76 = vpop.trf.xlu0
    %v77 = vpop.trf.xlu0
    %v78 = vpop.trf.xlu0
    %v79 = vpop.trf.xlu0
    %v80 = vpop.trf.xlu0
    %v81 = vpop.trf.xlu0
    %v82 = vpop.trf.xlu0
    %v83 = vpop.trf.xlu0
    %v84 = vpop.trf.xlu0
    %v85 = vpop.trf.xlu0
    %v86 = vpop.trf.xlu0
    %v87 = vpop.trf.xlu0
    %v88 = vsub.f32 %v53, %v72
    %v89 = vand.u32 2147483647, %v88
    %vm90 = vcmp.lt.f32.partialorder %v89, 1.0
    %v91 = vmul.f32 %v88, 0.5
    %v92 = vmul.f32 %v91, %v88
    %v93 = vsub.f32 %v89, 0.5
    %v94 = vsel %vm90, %v92, %v93
    %s95 = smul.u32 0, 8
    %v96 = vlaneseq
    %v97 = vshrl.u32 %v96, 7
    %v98 = vstv %s95
    %v99 = vadd.s32 %v98, %v97
    %vm100 = vcmp.lt.s32.totalorder %v99, 8
    %v101 = vsel %vm100, %v94, 0.0
    %vm102 = vcmask 7168
    %v103 = vsel %vm102, %v101, 0.0
    %v104 = vrot.slane %v103, 4
    %v105 = vadd.f32 %v103, %v104
    %v106 = vrot.slane %v105, 2
    %v107 = vadd.f32 %v105, %v106
    %v108 = vrot.slane %v107, 1
    %v109 = vadd.f32 %v107, %v108
    %111 = vset.pattern.permute.xlu0 0
    %112 = vperm.xlu0 %111, %v109
    %v113 = vpop.permute.xlu0 %112
    %115 = vst [vmem:[#allocation5] sm:$0x1] %v113
    // Predicated region
    $region14: #{tpu_custom_call.1} parent=1 // pred_check
      _
    $region15: #{tpu_custom_call.1} parent=1 // pred_check_branch
      %117 = sbr.rel (0) target = $region17
    $region16: #{tpu_custom_call.1} parent=1 // pred_region
      %s119 = ssub.s32 16, 16
      %120 = vsyncadd [#allocation4], %s119
      %s122 = sshll.u32 [#allocation5], 4
      %s123 = int_to_ptr.vmem [resolvable:$true] %s122
      %125 = dma.vmem_to_hbm [thread:$0]  %s123, 16, %s2, [#allocation4]
    $region17: #{tpu_custom_call.1} parent=1 // pred_fallthru
      _
    // Predicated region
    $region18: #{tpu_custom_call.1} parent=1 // pred_check
      _
    $region19: #{tpu_custom_call.1} parent=1 // pred_check_branch
      %127 = sbr.rel (0) target = $region21
    $region20: #{tpu_custom_call.1} parent=1 // pred_region
      %128 = dma.done [#allocation4], 16
    $region21: #{tpu_custom_call.1} parent=1 // pred_fallthru
      _
    %129 = vsyncpa [#allocation3], 1
    %130 = vsyncpa [#allocation4], 1

</llo_original>
